<compile_context>
chip_gen: v7x
topology: tpu7x:2x2x1
jax: 0.10.0
libtpu: 0.0.40
codegen_flags: <defaults>
</compile_context>

<pallas_src>
import functools
import math

import jax
import jax.numpy as jnp
from jax.experimental import pallas as pl
from jax.experimental.pallas import tpu as pltpu


def _round_up(x, mult):
    return (x + mult - 1) // mult * mult


def _arcface_kernel(*refs, m, cos_th, with_labels):
    if with_labels:
        (z_ref, w_ref, invz_ref, invw_ref, y_ref, s_ref,
         out_ref, acc_ref) = refs
    else:
        z_ref, w_ref, invz_ref, invw_ref, out_ref, acc_ref = refs
        y_ref = s_ref = None

    # All grid primitives evaluated at the top level of the body (never inside
    # a pl.when closure) -- required for clean lowering in every mode.
    k = pl.program_id(2)
    is_first = k == 0
    is_last = k == pl.num_programs(2) - 1
    col0 = pl.program_id(1) * out_ref.shape[-1] if with_labels else 0

    @pl.when(is_first)
    def _init():
        acc_ref[...] = jnp.zeros_like(acc_ref)

    # Pure matmul inner loop: raw (un-normalized) dot on the MXU, f32 accum.
    acc_ref[...] += jax.lax.dot_general(
        z_ref[...], w_ref[...], (((1,), (1,)), ((), ())),
        preferred_element_type=jnp.float32)

    @pl.when(is_last)
    def _finalize():
        # Normalization hoisted out of the k-loop: inv_z (tm,1) / inv_w (1,tn)
        # were computed once in the wrapper and are only applied here.
        cosine = acc_ref[...] * invz_ref[...] * invw_ref[...]
        if with_labels:
            ct = cosine * 0.9999                                # cos(theta)
            st = jnp.sqrt(jnp.maximum(1.0 - ct * ct, 0.0))      # sin(theta)>=0
            with_margin = ct * math.cos(m) - st * math.sin(m)   # cos(theta+m)
            col = jax.lax.broadcasted_iota(jnp.int32, ct.shape, 1) + col0
            is_target = y_ref[...] == col                       # (tm,1)==(tm,tn)
            # Margin applies iff target class AND theta < th
            # (theta < th  <=>  cos(theta) > cos(th), theta in [0, pi]).
            apply_m = jnp.logical_and(is_target, ct > cos_th)
            out_ref[...] = (s_ref[...] *
                            jnp.where(apply_m, with_margin, ct)
                            ).astype(out_ref.dtype)
        else:
            out_ref[...] = cosine.astype(out_ref.dtype)


def arc_margin_plus_forward(z, weight, y=None, *, v=0.0,
                            m=0.5, s_lower=0.5, s_upper=4.5,
                            block_m=512, block_n=512, block_k=1024,
                            use_bf16_matmul=True, out_dtype=None):
    """Pallas equivalent of ArcMarginProductPlus.forward(z, y).

    Per-generation tiling guidance (pass as block_m/block_n):
      v5e : 512x512 (ridge ~240 FLOP/B)          v7x : 512-640 (64 MiB VMEM)
      v6e : 1024x1024, vmem_limit already at 64 MiB (ridge ~640 FLOP/B)
    """
    N = z.shape[0]
    z2 = z.reshape(N, -1)                       # z.view(N, -1)
    D = z2.shape[1]
    C = weight.shape[0]
    if weight.shape[1] != D:
        raise ValueError("weight in_features does not match flattened z")
    cos_th = math.cos(math.pi - 1.01 * m)
    out_dtype = jnp.dtype(z2.dtype if out_dtype is None else out_dtype)

    # Tile sizes: multiples of (8, 128); shrink for small problems.
    tm = min(block_m, _round_up(N, 8))
    tn = min(block_n, _round_up(C, 128))
    tk = min(block_k, _round_up(D, 128))
    n_pad = _round_up(N, tm)
    c_pad = _round_up(C, tn)
    d_pad = _round_up(D, tk)

    # Row / class inverse norms, computed ONCE in plain XLA (O((N+C)*D)) and
    # applied in the kernel finalize step (hoisted out of the k reduction).
    # 1/max(||x||, 1e-12) == rsqrt(max(sum(x^2), 1e-24))  (F.normalize eps)
    z_f32 = z2.astype(jnp.float32)
    w_f32 = weight.astype(jnp.float32)
    inv_z = jax.lax.rsqrt(jnp.maximum(
        jnp.sum(z_f32 * z_f32, axis=1, keepdims=True), 1e-24))        # (N, 1)
    inv_w = jax.lax.rsqrt(jnp.maximum(
        jnp.sum(w_f32 * w_f32, axis=1, keepdims=True), 1e-24)).T      # (1, C)

    # bf16 MXU fast path for f32 inputs (accumulation stays f32).
    if use_bf16_matmul and z2.dtype == jnp.float32 and weight.dtype == jnp.float32:
        mat_dtype = jnp.bfloat16
    else:
        mat_dtype = jnp.promote_types(z2.dtype, weight.dtype)

    # Pad + cast fused in one XLA pass; skipped entirely when already aligned.
    # TODO(synk): in a training loop, keep the weight stored pre-padded and
    # pre-cast so this per-call pass over the (C, D) parameter disappears.
    z_p = z2.astype(mat_dtype)
    if (n_pad, d_pad) != (N, D):
        z_p = jnp.pad(z_p, ((0, n_pad - N), (0, d_pad - D)))
    w_p = weight.astype(mat_dtype)
    if (c_pad, d_pad) != (C, D):
        w_p = jnp.pad(w_p, ((0, c_pad - C), (0, d_pad - D)))
    inv_z_p = jnp.pad(inv_z, ((0, n_pad - N), (0, 0)))
    inv_w_p = jnp.pad(inv_w, ((0, 0), (0, c_pad - C)))

    grid = (n_pad // tm, c_pad // tn, d_pad // tk)
    with_labels = y is not None

    in_specs = [
        pl.BlockSpec((tm, tk), lambda i, j, k: (i, k)),    # z tile
        pl.BlockSpec((tn, tk), lambda i, j, k: (j, k)),    # weight tile
        pl.BlockSpec((tm, 1), lambda i, j, k: (i, 0)),     # inv ||z|| rows
        pl.BlockSpec((1, tn), lambda i, j, k: (0, j)),     # inv ||w|| classes
    ]
    args = [z_p, w_p, inv_z_p, inv_w_p]
    if with_labels:
        y_col = jnp.pad(y.astype(jnp.int32), (0, n_pad - N),
                        constant_values=-1).reshape(n_pad, 1)
        s_val = (jax.nn.sigmoid(jnp.asarray(v, jnp.float32).reshape(()))
                 * (s_upper - s_lower) + s_lower)
        s_val = s_val.reshape(1, 1).astype(jnp.float32)
        in_specs += [
            pl.BlockSpec((tm, 1), lambda i, j, k: (i, 0)),   # labels column
            pl.BlockSpec((1, 1), lambda i, j, k: (0, 0)),    # trainable scale s
        ]
        args += [y_col, s_val]

    kernel = functools.partial(_arcface_kernel, m=m, cos_th=cos_th,
                               with_labels=with_labels)

    # Accurate scheduler hint: z is re-read num_j times, w num_i times.
    n_i, n_j = grid[0], grid[1]
    bytes_accessed = (z_p.size * z_p.dtype.itemsize * n_j
                      + w_p.size * w_p.dtype.itemsize * n_i
                      + n_pad * c_pad * out_dtype.itemsize
                      + (inv_z_p.size * n_j + inv_w_p.size * n_i) * 4)
    transcendentals = n_pad * c_pad if with_labels else 0   # finalize sqrt

    out = pl.pallas_call(
        kernel,
        out_shape=jax.ShapeDtypeStruct((n_pad, c_pad), out_dtype),
        grid=grid,
        in_specs=in_specs,
        out_specs=pl.BlockSpec((tm, tn), lambda i, j, k: (i, j)),
        scratch_shapes=[
            pltpu.VMEM((tm, tn), jnp.float32),   # f32 dot accumulator
        ],
        compiler_params=pltpu.CompilerParams(
            dimension_semantics=("parallel", "parallel", "arbitrary"),
            vmem_limit_bytes=64 * 1024 * 1024,
        ),
        cost_estimate=pl.CostEstimate(
            flops=2 * n_pad * c_pad * d_pad,
            transcendentals=transcendentals,
            bytes_accessed=bytes_accessed,
        ),
    )(*args)

    if (n_pad, c_pad) != (N, C):
        out = out[:N, :C]
    return out


if __name__ == "__main__":
    # Small shapes consistent with the module's forward().
    N, C_in, H, W = 2, 4, 16, 16
    in_features = C_in * H * W           # 1024
    out_features = 10
    m_param, s_lower, s_upper = 0.5, 0.5, 4.5

    key = jax.random.PRNGKey(0)
    k_x, k_w, k_y = jax.random.split(key, 3)

    x = jax.random.normal(k_x, (N, C_in, H, W), dtype=jnp.float32)

    # Deterministic Xavier-uniform init of weight (out_features, in_features).
    bound = math.sqrt(6.0 / (in_features + out_features))
    weight = jax.random.uniform(k_w, (out_features, in_features),
                                minval=-bound, maxval=bound, dtype=jnp.float32)
    y = jax.random.randint(k_y, (N,), 0, out_features)
    v = jnp.zeros((1,), jnp.float32)     # the trainable 'v' parameter (init 0)

    # Pure-JAX reference mirroring the PyTorch module.
    def reference(z, w, labels, v_param):
        n = z.shape[0]
        z2 = z.reshape(n, -1)
        zn = z2 / jnp.maximum(
            jnp.sqrt(jnp.sum(z2 * z2, axis=1, keepdims=True)), 1e-12)
        wn = w / jnp.maximum(
            jnp.sqrt(jnp.sum(w * w, axis=1, keepdims=True)), 1e-12)
        cos = zn @ wn.T
        if labels is None:
            return cos
        th = math.pi - 1.01 * m_param
        theta = jnp.arccos(cos * 0.9999)
        delta = jnp.where(theta >= th, 0.0, m_param)
        one_hot = jax.nn.one_hot(labels, w.shape[0], dtype=z2.dtype)
        s = jax.nn.sigmoid(v_param)[0] * (s_upper - s_lower) + s_lower
        return s * jnp.cos(theta + one_hot * delta)

    ref_cos = reference(x, weight, None, v)
    ref_scores = reference(x, weight, y, v)

    # Path 1/2 with the default bf16-MXU fast path.
    cosine = arc_margin_plus_forward(x, weight, None, v=v, m=m_param,
                                     s_lower=s_lower, s_upper=s_upper)
    scores = arc_margin_plus_forward(x, weight, y, v=v, m=m_param,
                                     s_lower=s_lower, s_upper=s_upper)
    # Same paths at full f32 matmul precision.
    cosine_f32 = arc_margin_plus_forward(x, weight, None, v=v, m=m_param,
                                         s_lower=s_lower, s_upper=s_upper,
                                         use_bf16_matmul=False)
    scores_f32 = arc_margin_plus_forward(x, weight, y, v=v, m=m_param,
                                         s_lower=s_lower, s_upper=s_upper,
                                         use_bf16_matmul=False)
    jax.block_until_ready(cosine)
    jax.block_until_ready(scores)
    jax.block_until_ready(cosine_f32)
    jax.block_until_ready(scores_f32)

    assert cosine.shape == (N, out_features)
    assert scores.shape == (N, out_features)
    for arr in (cosine, scores, cosine_f32, scores_f32):
        assert bool(jnp.all(jnp.isfinite(arr)))

    # f32 path must match the reference tightly.
    assert bool(jnp.allclose(cosine_f32, ref_cos, atol=1e-4, rtol=1e-4))
    assert bool(jnp.allclose(scores_f32, ref_scores, atol=1e-4, rtol=1e-4))
    # bf16-MXU path: cosine error is O(1e-3) at worst.
    assert bool(jnp.allclose(cosine, ref_cos, atol=5e-3, rtol=5e-3))
    assert bool(jnp.allclose(scores, ref_scores, atol=2e-2, rtol=1e-2))

    print("KERNEL_OK")
</pallas_src>

<mosaic_0001>
module attributes {stable_mosaic.version = 11 : i64} {
  func.func @_arcface_kernel(%arg0: i32, %arg1: i32, %arg2: i32, %arg3: memref<8x1024xbf16, #tpu.memory_space<vmem>>, %arg4: memref<128x1024xbf16, #tpu.memory_space<vmem>>, %arg5: memref<8x1xf32, #tpu.memory_space<vmem>>, %arg6: memref<1x128xf32, #tpu.memory_space<vmem>>, %arg7: memref<8x128xf32, #tpu.memory_space<vmem>>, %arg8: memref<8x128xf32, #tpu.memory_space<vmem>>) attributes {dimension_semantics = [#tpu.dimension_semantics<parallel>, #tpu.dimension_semantics<parallel>, #tpu.dimension_semantics<arbitrary>], iteration_bounds = array<i64: 1, 1, 1>, scalar_prefetch = 0 : i64, scratch_operands = 1 : i64, tpu.core_type = #tpu.core_type<tc>, window_params = [{transform_indices = @transform_0, window_bounds = array<i64: 8, 1024>}, {transform_indices = @transform_1, window_bounds = array<i64: 128, 1024>}, {transform_indices = @transform_2, window_bounds = array<i64: 8, 1>}, {transform_indices = @transform_3, window_bounds = array<i64: 1, 128>}, {transform_indices = @transform_4, window_bounds = array<i64: 8, 128>}]} {
    %c0_i32 = arith.constant 0 : i32
    %0 = arith.cmpi eq, %arg2, %c0_i32 : i32
    %c0_i32_0 = arith.constant 0 : i32
    %1 = arith.cmpi eq, %arg2, %c0_i32_0 : i32
    %2 = arith.extui %0 : i1 to i32
    %c0_i32_1 = arith.constant 0 : i32
    %3 = arith.cmpi ne, %2, %c0_i32_1 : i32
    scf.if %3 {
      %cst_10 = arith.constant 0.000000e+00 : f32
      %12 = vector.broadcast %cst_10 : f32 to vector<8x128xf32>
      %c0_11 = arith.constant 0 : index
      %c0_12 = arith.constant 0 : index
      %13 = vector.load %arg8[%c0_11, %c0_12] : memref<8x128xf32, #tpu.memory_space<vmem>>, vector<8x128xf32>
      tpu.vector_store %arg8[%c0_11, %c0_12], %12 {strides = array<i32>} : memref<8x128xf32, #tpu.memory_space<vmem>>, vector<8x128xf32>,
    } else {
    }
    %c0 = arith.constant 0 : index
    %c0_2 = arith.constant 0 : index
    %4 = vector.load %arg8[%c0, %c0_2] : memref<8x128xf32, #tpu.memory_space<vmem>>, vector<8x128xf32>
    %c0_3 = arith.constant 0 : index
    %c0_4 = arith.constant 0 : index
    %5 = vector.load %arg3[%c0_3, %c0_4] : memref<8x1024xbf16, #tpu.memory_space<vmem>>, vector<8x1024xbf16>
    %c0_5 = arith.constant 0 : index
    %c0_6 = arith.constant 0 : index
    %6 = vector.load %arg4[%c0_5, %c0_6] : memref<128x1024xbf16, #tpu.memory_space<vmem>>, vector<128x1024xbf16>
    %cst = arith.constant dense<0.000000e+00> : vector<8x128xf32>
    %7 = tpu.matmul %5, %6, %cst {dimension_numbers = #tpu.dot_dimension_numbers<[1], [1], [0], [0], [0, 0, 1, 0], [], []>} : vector<8x1024xbf16>, vector<128x1024xbf16>, vector<8x128xf32> -> vector<8x128xf32>
    %8 = arith.addf %4, %7 : vector<8x128xf32>
    %c0_7 = arith.constant 0 : index
    %c0_8 = arith.constant 0 : index
    %9 = vector.load %arg8[%c0_7, %c0_8] : memref<8x128xf32, #tpu.memory_space<vmem>>, vector<8x128xf32>
    tpu.vector_store %arg8[%c0_7, %c0_8], %8 {strides = array<i32>} : memref<8x128xf32, #tpu.memory_space<vmem>>, vector<8x128xf32>,
    %10 = arith.extui %1 : i1 to i32
    %c0_i32_9 = arith.constant 0 : i32
    %11 = arith.cmpi ne, %10, %c0_i32_9 : i32
    scf.if %11 {
      %c0_10 = arith.constant 0 : index
      %c0_11 = arith.constant 0 : index
      %12 = vector.load %arg8[%c0_10, %c0_11] : memref<8x128xf32, #tpu.memory_space<vmem>>, vector<8x128xf32>
      %c0_12 = arith.constant 0 : index
      %c0_13 = arith.constant 0 : index
      %13 = vector.load %arg5[%c0_12, %c0_13] : memref<8x1xf32, #tpu.memory_space<vmem>>, vector<8x1xf32>
      %14 = vector.broadcast %13 : vector<8x1xf32> to vector<8x128xf32>
      %15 = arith.mulf %12, %14 : vector<8x128xf32>
      %c0_14 = arith.constant 0 : index
      %c0_15 = arith.constant 0 : index
      %16 = vector.load %arg6[%c0_14, %c0_15] : memref<1x128xf32, #tpu.memory_space<vmem>>, vector<1x128xf32>
      %17 = vector.broadcast %16 : vector<1x128xf32> to vector<8x128xf32>
      %18 = arith.mulf %15, %17 : vector<8x128xf32>
      %c0_16 = arith.constant 0 : index
      %c0_17 = arith.constant 0 : index
      %19 = vector.load %arg7[%c0_16, %c0_17] : memref<8x128xf32, #tpu.memory_space<vmem>>, vector<8x128xf32>
      tpu.vector_store %arg7[%c0_16, %c0_17], %18 {strides = array<i32>} : memref<8x128xf32, #tpu.memory_space<vmem>>, vector<8x128xf32>,
    } else {
    }
    return
  }
  func.func @transform_0(%arg0: i32, %arg1: i32, %arg2: i32) -> (i32, i32) {
    %c0_i32 = arith.constant 0 : i32
    return %arg0, %arg2 : i32, i32
  }
  func.func @transform_1(%arg0: i32, %arg1: i32, %arg2: i32) -> (i32, i32) {
    %c0_i32 = arith.constant 0 : i32
    return %arg1, %arg2 : i32, i32
  }
  func.func @transform_2(%arg0: i32, %arg1: i32, %arg2: i32) -> (i32, i32) {
    %c0_i32 = arith.constant 0 : i32
    %c0_i32_0 = arith.constant 0 : i32
    return %arg0, %c0_i32 : i32, i32
  }
  func.func @transform_3(%arg0: i32, %arg1: i32, %arg2: i32) -> (i32, i32) {
    %c0_i32 = arith.constant 0 : i32
    %c0_i32_0 = arith.constant 0 : i32
    return %c0_i32, %arg1 : i32, i32
  }
  func.func @transform_4(%arg0: i32, %arg1: i32, %arg2: i32) -> (i32, i32) {
    %c0_i32 = arith.constant 0 : i32
    return %arg0, %arg1 : i32, i32
  }
}

</mosaic_0001>

<llo_original>
// kernel: tpu_custom_call.1
$region0: #{tpu_custom_call.1}
  #allocation0 [shape = 'u32[]', space=smem, size = 0x4, offset = 0x4, fixed_abs, tag = 'smem constant byte address 0x4 - core index']
  #allocation1 [shape = 'u32[144,128]{1,0:T(1,128)}', space=vmem, size = 0x12000, scoped, tag = 'internal scratch']
  #allocation2 [shape = 'f32[8,128]{1,0:T(8,128)}', space=vmem, size = 0x1000, scoped, tag = 'scratch operand']
  %s0 = inlined_call_operand.hbm [shape: bf16[8,1024], index: 0, kind: input, shape index: {}]
  %s1 = inlined_call_operand.hbm [shape: bf16[128,1024], index: 1, kind: input, shape index: {}]
  %s2 = inlined_call_operand.hbm [shape: f32[8,1], index: 2, kind: input, shape index: {}]
  %s3 = inlined_call_operand.hbm [shape: f32[1,128], index: 3, kind: input, shape index: {}]
  %s4 = inlined_call_operand.hbm [shape: f32[8,128], index: 4, kind: output, shape index: {}]
  %s5 = sld [smem:[#allocation0]]
  $region50: #{tpu_custom_call.1} parent=0
    _
  %s7 = ssub.s32 1, %s5
  %s8 = scalar_select 0, %s7, %s5
  $region1: #{tpu_custom_call.1} parent=0
    #allocation3 [shape = 'u8[16384]{0}', space=vmem, size = 0x4000, scoped, tag = 'input window, operand 0, single buffered']
    #allocation4 [shape = 's32[1]{0}', space=sflag, size = 0x4, scoped, tag = 'scoped memory for tpu_custom_call.1']
    #allocation5 [shape = 's32[1]{0}', space=sflag, size = 0x4, scoped, tag = 'scoped memory for tpu_custom_call.1']
    #allocation6 [shape = 'u8[262144]{0}', space=vmem, size = 0x40000, scoped, tag = 'input window, operand 1, single buffered']
    #allocation7 [shape = 's32[1]{0}', space=sflag, size = 0x4, scoped, tag = 'scoped memory for tpu_custom_call.1']
    #allocation8 [shape = 'u8[4096]{0}', space=vmem, size = 0x1000, scoped, tag = 'input window, operand 2, single buffered']
    #allocation9 [shape = 'u8[512]{0}', space=vmem, size = 0x400, scoped, tag = 'input window, operand 3, single buffered']
    #allocation10 [shape = 's32[1]{0}', space=sflag, size = 0x4, scoped, tag = 'scoped memory for tpu_custom_call.1']
    #allocation11 [shape = 'u8[4096]{0}', space=vmem, size = 0x1000, scoped, tag = 'output window, operand 0, single buffered']
    %9 = vsyncpa [#allocation4], 0
    %10 = vsyncpa [#allocation7], 0
    %11 = vsyncpa [#allocation10], 0
    %12 = vsyncpa [#allocation5], 0
    // Predicated region
    $region2: #{tpu_custom_call.1} parent=1 // pred_check
      _
    $region3: #{tpu_custom_call.1} parent=1 // pred_check_branch
      %14 = sbr.rel (0) target = $region5
    $region4: #{tpu_custom_call.1} parent=1 // pred_region
      %s16 = ssub.s32 512, 512
      %17 = vsyncadd [#allocation4], %s16
      %s19 = sshll.u32 [#allocation3], 4
      %s20 = int_to_ptr.vmem [resolvable:$true] %s19
      %22 = dma.hbm_to_vmem [thread:$0]  %s0, 512, %s20, [#allocation4]
    $region5: #{tpu_custom_call.1} parent=1 // pred_fallthru
      _
    // Predicated region
    $region6: #{tpu_custom_call.1} parent=1 // pred_check
      _
    $region7: #{tpu_custom_call.1} parent=1 // pred_check_branch
      %24 = sbr.rel (0) target = $region9
    $region8: #{tpu_custom_call.1} parent=1 // pred_region
      %s26 = ssub.s32 8192, 8192
      %27 = vsyncadd [#allocation7], %s26
      %s28 = sshll.u32 [#allocation6], 4
      %s29 = int_to_ptr.vmem [resolvable:$true] %s28
      %34 = dma.hbm_to_vmem [thread:$0]  %s1, 8192, %s29, [#allocation7], 512, 512, 32
    $region9: #{tpu_custom_call.1} parent=1 // pred_fallthru
      _
    // Predicated region
    $region10: #{tpu_custom_call.1} parent=1 // pred_check
      _
    $region11: #{tpu_custom_call.1} parent=1 // pred_check_branch
      %36 = sbr.rel (0) target = $region13
    $region12: #{tpu_custom_call.1} parent=1 // pred_region
      %s38 = ssub.s32 128, 128
      %39 = vsyncadd [#allocation7], %s38
      %s41 = sshll.u32 [#allocation8], 4
      %s42 = int_to_ptr.vmem [resolvable:$true] %s41
      %44 = dma.hbm_to_vmem [thread:$0]  %s2, 128, %s42, [#allocation7]
    $region13: #{tpu_custom_call.1} parent=1 // pred_fallthru
      _
    // Predicated region
    $region14: #{tpu_custom_call.1} parent=1 // pred_check
      _
    $region15: #{tpu_custom_call.1} parent=1 // pred_check_branch
      %46 = sbr.rel (0) target = $region17
    $region16: #{tpu_custom_call.1} parent=1 // pred_region
      %s48 = ssub.s32 16, 16
      %49 = vsyncadd [#allocation10], %s48
      %s51 = sshll.u32 [#allocation9], 4
      %s52 = int_to_ptr.vmem [resolvable:$true] %s51
      %54 = dma.hbm_to_vmem [thread:$0]  %s3, 16, %s52, [#allocation10]
    $region17: #{tpu_custom_call.1} parent=1 // pred_fallthru
      _
    // Predicated region
    $region18: #{tpu_custom_call.1} parent=1 // pred_check
      _
    $region19: #{tpu_custom_call.1} parent=1 // pred_check_branch
      %56 = sbr.rel (0) target = $region21
    $region20: #{tpu_custom_call.1} parent=1 // pred_region
      %57 = dma.done [#allocation4], 512
    $region21: #{tpu_custom_call.1} parent=1 // pred_fallthru
      _
    // Predicated region
    $region22: #{tpu_custom_call.1} parent=1 // pred_check
      _
    $region23: #{tpu_custom_call.1} parent=1 // pred_check_branch
      %59 = sbr.rel (0) target = $region25
    $region24: #{tpu_custom_call.1} parent=1 // pred_region
      %60 = dma.done [#allocation7], 8192
    $region25: #{tpu_custom_call.1} parent=1 // pred_fallthru
      _
    // Predicated region
    $region26: #{tpu_custom_call.1} parent=1 // pred_check
      _
    $region27: #{tpu_custom_call.1} parent=1 // pred_check_branch
      %62 = sbr.rel (0) target = $region29
    $region28: #{tpu_custom_call.1} parent=1 // pred_region
      %63 = dma.done [#allocation7], 128
    $region29: #{tpu_custom_call.1} parent=1 // pred_fallthru
      _
    // Predicated region
    $region30: #{tpu_custom_call.1} parent=1 // pred_check
      _
    $region31: #{tpu_custom_call.1} parent=1 // pred_check_branch
      %65 = sbr.rel (0) target = $region33
    $region32: #{tpu_custom_call.1} parent=1 // pred_region
      %66 = dma.done [#allocation10], 16
    $region33: #{tpu_custom_call.1} parent=1 // pred_fallthru
      _
    %p68 = scmp.eq.s32.totalorder 0, 0
    // Predicated region
    $region34: #{tpu_custom_call.1} parent=1 // pred_check
      %p69 = pneg %p68
    $region35: #{tpu_custom_call.1} parent=1 // pred_check_branch
      %71 = sbr.rel (%p69) target = $region37
    $region36: #{tpu_custom_call.1} parent=1 // pred_region
      %72 = vst [vmem:[#allocation2] sm:$0xff] 0.0
    $region37: #{tpu_custom_call.1} parent=1 // pred_fallthru
      _
    %v73 = vld [vmem:[#allocation2] sm:$0xff]
    %v74 = vld [vmem:[#allocation3] sm:$0xff]
    %v75 = vld [vmem:[#allocation3 + $0x8] sm:$0xff]
    %v76 = vld [vmem:[#allocation3 + $0x10] sm:$0xff]
    %v77 = vld [vmem:[#allocation3 + $0x18] sm:$0xff]
    %v78 = vld [vmem:[#allocation6] sm:$0xff]
    %v79 = vld [vmem:[#allocation6 + $0x8] sm:$0xff]
    %v80 = vld [vmem:[#allocation6 + $0x10] sm:$0xff]
    %v81 = vld [vmem:[#allocation6 + $0x18] sm:$0xff]
    %v82 = vld [vmem:[#allocation6 + $0x20] sm:$0xff]
    %v83 = vld [vmem:[#allocation6 + $0x28] sm:$0xff]
    %v84 = vld [vmem:[#allocation6 + $0x30] sm:$0xff]
    %v85 = vld [vmem:[#allocation6 + $0x38] sm:$0xff]
    %v86 = vld [vmem:[#allocation6 + $0x40] sm:$0xff]
    %v87 = vld [vmem:[#allocation6 + $0x48] sm:$0xff]
    %v88 = vld [vmem:[#allocation6 + $0x50] sm:$0xff]
    %v89 = vld [vmem:[#allocation6 + $0x58] sm:$0xff]
    %v90 = vld [vmem:[#allocation6 + $0x60] sm:$0xff]
    %v91 = vld [vmem:[#allocation6 + $0x68] sm:$0xff]
    %v92 = vld [vmem:[#allocation6 + $0x70] sm:$0xff]
    %v93 = vld [vmem:[#allocation6 + $0x78] sm:$0xff]
    %v94 = vld [vmem:[#allocation6 + $0x80] sm:$0xff]
    %v95 = vld [vmem:[#allocation6 + $0x88] sm:$0xff]
    %v96 = vld [vmem:[#allocation6 + $0x90] sm:$0xff]
    %v97 = vld [vmem:[#allocation6 + $0x98] sm:$0xff]
    %v98 = vld [vmem:[#allocation6 + $0xa0] sm:$0xff]
    %v99 = vld [vmem:[#allocation6 + $0xa8] sm:$0xff]
    %v100 = vld [vmem:[#allocation6 + $0xb0] sm:$0xff]
    %v101 = vld [vmem:[#allocation6 + $0xb8] sm:$0xff]
    %v102 = vld [vmem:[#allocation6 + $0xc0] sm:$0xff]
    %v103 = vld [vmem:[#allocation6 + $0xc8] sm:$0xff]
    %v104 = vld [vmem:[#allocation6 + $0xd0] sm:$0xff]
    %v105 = vld [vmem:[#allocation6 + $0xd8] sm:$0xff]
    %v106 = vld [vmem:[#allocation6 + $0xe0] sm:$0xff]
    %v107 = vld [vmem:[#allocation6 + $0xe8] sm:$0xff]
    %v108 = vld [vmem:[#allocation6 + $0xf0] sm:$0xff]
    %v109 = vld [vmem:[#allocation6 + $0xf8] sm:$0xff]
    %v110 = vld [vmem:[#allocation6 + $0x100] sm:$0xff]
    %v111 = vld [vmem:[#allocation6 + $0x108] sm:$0xff]
    %v112 = vld [vmem:[#allocation6 + $0x110] sm:$0xff]
    %v113 = vld [vmem:[#allocation6 + $0x118] sm:$0xff]
    %v114 = vld [vmem:[#allocation6 + $0x120] sm:$0xff]
    %v115 = vld [vmem:[#allocation6 + $0x128] sm:$0xff]
    %v116 = vld [vmem:[#allocation6 + $0x130] sm:$0xff]
    %v117 = vld [vmem:[#allocation6 + $0x138] sm:$0xff]
    %v118 = vld [vmem:[#allocation6 + $0x140] sm:$0xff]
    %v119 = vld [vmem:[#allocation6 + $0x148] sm:$0xff]
    %v120 = vld [vmem:[#allocation6 + $0x150] sm:$0xff]
    %v121 = vld [vmem:[#allocation6 + $0x158] sm:$0xff]
    %v122 = vld [vmem:[#allocation6 + $0x160] sm:$0xff]
    %v123 = vld [vmem:[#allocation6 + $0x168] sm:$0xff]
    %v124 = vld [vmem:[#allocation6 + $0x170] sm:$0xff]
    %v125 = vld [vmem:[#allocation6 + $0x178] sm:$0xff]
    %v126 = vld [vmem:[#allocation6 + $0x180] sm:$0xff]
    %v127 = vld [vmem:[#allocation6 + $0x188] sm:$0xff]
    %v128 = vld [vmem:[#allocation6 + $0x190] sm:$0xff]
    %v129 = vld [vmem:[#allocation6 + $0x198] sm:$0xff]
    %v130 = vld [vmem:[#allocation6 + $0x1a0] sm:$0xff]
    %v131 = vld [vmem:[#allocation6 + $0x1a8] sm:$0xff]
    %v132 = vld [vmem:[#allocation6 + $0x1b0] sm:$0xff]
    %v133 = vld [vmem:[#allocation6 + $0x1b8] sm:$0xff]
    %v134 = vld [vmem:[#allocation6 + $0x1c0] sm:$0xff]
    %v135 = vld [vmem:[#allocation6 + $0x1c8] sm:$0xff]
    %v136 = vld [vmem:[#allocation6 + $0x1d0] sm:$0xff]
    %v137 = vld [vmem:[#allocation6 + $0x1d8] sm:$0xff]
    %v138 = vld [vmem:[#allocation6 + $0x1e0] sm:$0xff]
    %v139 = vld [vmem:[#allocation6 + $0x1e8] sm:$0xff]
    %v140 = vld [vmem:[#allocation6 + $0x1f0] sm:$0xff]
    %v141 = vld [vmem:[#allocation6 + $0x1f8] sm:$0xff]
    %v146 = vunpack.c.l.b16 %v74
    %v147 = vunpack.c.h.b16 %v74
    %v148 = vunpack.c.l.b16 %v75
    %v149 = vunpack.c.h.b16 %v75
    %v150 = vunpack.c.l.b16 %v76
    %v151 = vunpack.c.h.b16 %v76
    %v152 = vunpack.c.l.b16 %v77
    %v153 = vunpack.c.h.b16 %v77
    %v154 = vpack.c.b16 %v146, %v146
    %v155 = vpack.c.b16 %v147, %v147
    %v156 = vpack.c.b16 %v148, %v148
    %v157 = vpack.c.b16 %v149, %v149
    %v158 = vpack.c.b16 %v150, %v150
    %v159 = vpack.c.b16 %v151, %v151
    %v160 = vpack.c.b16 %v152, %v152
    %v161 = vpack.c.b16 %v153, %v153
    %v234 = vunpack.c.l.b16 %v78
    %v235 = vunpack.c.h.b16 %v78
    %v236 = vunpack.c.l.b16 %v79
    %v237 = vunpack.c.h.b16 %v79
    %v238 = vunpack.c.l.b16 %v80
    %v239 = vunpack.c.h.b16 %v80
    %v240 = vunpack.c.l.b16 %v81
    %v241 = vunpack.c.h.b16 %v81
    %v242 = vunpack.c.l.b16 %v82
    %v243 = vunpack.c.h.b16 %v82
    %v244 = vunpack.c.l.b16 %v83
    %v245 = vunpack.c.h.b16 %v83
    %v246 = vunpack.c.l.b16 %v84
    %v247 = vunpack.c.h.b16 %v84
    %v248 = vunpack.c.l.b16 %v85
    %v249 = vunpack.c.h.b16 %v85
    %v250 = vunpack.c.l.b16 %v86
    %v251 = vunpack.c.h.b16 %v86
    %v252 = vunpack.c.l.b16 %v87
    %v253 = vunpack.c.h.b16 %v87
    %v254 = vunpack.c.l.b16 %v88
    %v255 = vunpack.c.h.b16 %v88
    %v256 = vunpack.c.l.b16 %v89
    %v257 = vunpack.c.h.b16 %v89
    %v258 = vunpack.c.l.b16 %v90
    %v259 = vunpack.c.h.b16 %v90
    %v260 = vunpack.c.l.b16 %v91
    %v261 = vunpack.c.h.b16 %v91
    %v262 = vunpack.c.l.b16 %v92
    %v263 = vunpack.c.h.b16 %v92
    %v264 = vunpack.c.l.b16 %v93
    %v265 = vunpack.c.h.b16 %v93
    %v266 = vunpack.c.l.b16 %v94
    %v267 = vunpack.c.h.b16 %v94
    %v268 = vunpack.c.l.b16 %v95
    %v269 = vunpack.c.h.b16 %v95
    %v270 = vunpack.c.l.b16 %v96
    %v271 = vunpack.c.h.b16 %v96
    %v272 = vunpack.c.l.b16 %v97
    %v273 = vunpack.c.h.b16 %v97
    %v274 = vunpack.c.l.b16 %v98
    %v275 = vunpack.c.h.b16 %v98
    %v276 = vunpack.c.l.b16 %v99
    %v277 = vunpack.c.h.b16 %v99
    %v278 = vunpack.c.l.b16 %v100
    %v279 = vunpack.c.h.b16 %v100
    %v280 = vunpack.c.l.b16 %v101
    %v281 = vunpack.c.h.b16 %v101
    %v282 = vunpack.c.l.b16 %v102
    %v283 = vunpack.c.h.b16 %v102
    %v284 = vunpack.c.l.b16 %v103
    %v285 = vunpack.c.h.b16 %v103
    %v286 = vunpack.c.l.b16 %v104
    %v287 = vunpack.c.h.b16 %v104
    %v288 = vunpack.c.l.b16 %v105
    %v289 = vunpack.c.h.b16 %v105
    %v290 = vunpack.c.l.b16 %v106
    %v291 = vunpack.c.h.b16 %v106
    %v292 = vunpack.c.l.b16 %v107
    %v293 = vunpack.c.h.b16 %v107
    %v294 = vunpack.c.l.b16 %v108
    %v295 = vunpack.c.h.b16 %v108
    %v296 = vunpack.c.l.b16 %v109
    %v297 = vunpack.c.h.b16 %v109
    %v298 = vunpack.c.l.b16 %v110
    %v299 = vunpack.c.h.b16 %v110
    %v300 = vunpack.c.l.b16 %v111
    %v301 = vunpack.c.h.b16 %v111
    %v302 = vunpack.c.l.b16 %v112
    %v303 = vunpack.c.h.b16 %v112
    %v304 = vunpack.c.l.b16 %v113
    %v305 = vunpack.c.h.b16 %v113
    %v306 = vunpack.c.l.b16 %v114
    %v307 = vunpack.c.h.b16 %v114
    %v308 = vunpack.c.l.b16 %v115
    %v309 = vunpack.c.h.b16 %v115
    %v310 = vunpack.c.l.b16 %v116
    %v311 = vunpack.c.h.b16 %v116
    %v312 = vunpack.c.l.b16 %v117
    %v313 = vunpack.c.h.b16 %v117
    %v314 = vunpack.c.l.b16 %v118
    %v315 = vunpack.c.h.b16 %v118
    %v316 = vunpack.c.l.b16 %v119
    %v317 = vunpack.c.h.b16 %v119
    %v318 = vunpack.c.l.b16 %v120
    %v319 = vunpack.c.h.b16 %v120
    %v320 = vunpack.c.l.b16 %v121
    %v321 = vunpack.c.h.b16 %v121
    %v322 = vunpack.c.l.b16 %v122
    %v323 = vunpack.c.h.b16 %v122
    %v324 = vunpack.c.l.b16 %v123
    %v325 = vunpack.c.h.b16 %v123
    %v326 = vunpack.c.l.b16 %v124
    %v327 = vunpack.c.h.b16 %v124
    %v328 = vunpack.c.l.b16 %v125
    %v329 = vunpack.c.h.b16 %v125
    %v330 = vunpack.c.l.b16 %v126
    %v331 = vunpack.c.h.b16 %v126
    %v332 = vunpack.c.l.b16 %v127
    %v333 = vunpack.c.h.b16 %v127
    %v334 = vunpack.c.l.b16 %v128
    %v335 = vunpack.c.h.b16 %v128
    %v336 = vunpack.c.l.b16 %v129
    %v337 = vunpack.c.h.b16 %v129
    %v338 = vunpack.c.l.b16 %v130
    %v339 = vunpack.c.h.b16 %v130
    %v340 = vunpack.c.l.b16 %v131
    %v341 = vunpack.c.h.b16 %v131
    %v342 = vunpack.c.l.b16 %v132
    %v343 = vunpack.c.h.b16 %v132
    %v344 = vunpack.c.l.b16 %v133
    %v345 = vunpack.c.h.b16 %v133
    %v346 = vunpack.c.l.b16 %v134
    %v347 = vunpack.c.h.b16 %v134
    %v348 = vunpack.c.l.b16 %v135
    %v349 = vunpack.c.h.b16 %v135
    %v350 = vunpack.c.l.b16 %v136
    %v351 = vunpack.c.h.b16 %v136
    %v352 = vunpack.c.l.b16 %v137
    %v353 = vunpack.c.h.b16 %v137
    %v354 = vunpack.c.l.b16 %v138
    %v355 = vunpack.c.h.b16 %v138
    %v356 = vunpack.c.l.b16 %v139
    %v357 = vunpack.c.h.b16 %v139
    %v358 = vunpack.c.l.b16 %v140
    %v359 = vunpack.c.h.b16 %v140
    %v360 = vunpack.c.l.b16 %v141
    %v361 = vunpack.c.h.b16 %v141
    %v362 = vpack.c.b16 %v242, %v234
    %v363 = vpack.c.b16 %v243, %v235
    %v364 = vpack.c.b16 %v244, %v236
    %v365 = vpack.c.b16 %v245, %v237
    %v366 = vpack.c.b16 %v246, %v238
    %v367 = vpack.c.b16 %v247, %v239
    %v368 = vpack.c.b16 %v248, %v240
    %v369 = vpack.c.b16 %v249, %v241
    %v370 = vpack.c.b16 %v258, %v250
    %v371 = vpack.c.b16 %v259, %v251
    %v372 = vpack.c.b16 %v260, %v252
    %v373 = vpack.c.b16 %v261, %v253
    %v374 = vpack.c.b16 %v262, %v254
    %v375 = vpack.c.b16 %v263, %v255
    %v376 = vpack.c.b16 %v264, %v256
    %v377 = vpack.c.b16 %v265, %v257
    %v378 = vpack.c.b16 %v274, %v266
    %v379 = vpack.c.b16 %v275, %v267
    %v380 = vpack.c.b16 %v276, %v268
    %v381 = vpack.c.b16 %v277, %v269
    %v382 = vpack.c.b16 %v278, %v270
    %v383 = vpack.c.b16 %v279, %v271
    %v384 = vpack.c.b16 %v280, %v272
    %v385 = vpack.c.b16 %v281, %v273
    %v386 = vpack.c.b16 %v290, %v282
    %v387 = vpack.c.b16 %v291, %v283
    %v388 = vpack.c.b16 %v292, %v284
    %v389 = vpack.c.b16 %v293, %v285
    %v390 = vpack.c.b16 %v294, %v286
    %v391 = vpack.c.b16 %v295, %v287
    %v392 = vpack.c.b16 %v296, %v288
    %v393 = vpack.c.b16 %v297, %v289
    %v394 = vpack.c.b16 %v306, %v298
    %v395 = vpack.c.b16 %v307, %v299
    %v396 = vpack.c.b16 %v308, %v300
    %v397 = vpack.c.b16 %v309, %v301
    %v398 = vpack.c.b16 %v310, %v302
    %v399 = vpack.c.b16 %v311, %v303
    %v400 = vpack.c.b16 %v312, %v304
    %v401 = vpack.c.b16 %v313, %v305
    %v402 = vpack.c.b16 %v322, %v314
    %v403 = vpack.c.b16 %v323, %v315
    %v404 = vpack.c.b16 %v324, %v316
    %v405 = vpack.c.b16 %v325, %v317
    %v406 = vpack.c.b16 %v326, %v318
    %v407 = vpack.c.b16 %v327, %v319
    %v408 = vpack.c.b16 %v328, %v320
    %v409 = vpack.c.b16 %v329, %v321
    %v410 = vpack.c.b16 %v338, %v330
    %v411 = vpack.c.b16 %v339, %v331
    %v412 = vpack.c.b16 %v340, %v332
    %v413 = vpack.c.b16 %v341, %v333
    %v414 = vpack.c.b16 %v342, %v334
    %v415 = vpack.c.b16 %v343, %v335
    %v416 = vpack.c.b16 %v344, %v336
    %v417 = vpack.c.b16 %v345, %v337
    %v418 = vpack.c.b16 %v354, %v346
    %v419 = vpack.c.b16 %v355, %v347
    %v420 = vpack.c.b16 %v356, %v348
    %v421 = vpack.c.b16 %v357, %v349
    %v422 = vpack.c.b16 %v358, %v350
    %v423 = vpack.c.b16 %v359, %v351
    %v424 = vpack.c.b16 %v360, %v352
    %v425 = vpack.c.b16 %v361, %v353
    %490 = vmatprep.subr.bf16.mxu0 %v363
    %491 = vmatpush1.bf16.xpose.msra.mxu0 %v362
    %492 = vmatprep.subr.bf16.mxu0 %v371
    %493 = vmatpush1.bf16.xpose.msra.mxu0 %v370
    %494 = vmatprep.subr.bf16.mxu0 %v379
    %495 = vmatpush1.bf16.xpose.msra.mxu0 %v378
    %496 = vmatprep.subr.bf16.mxu0 %v387
    %497 = vmatpush1.bf16.xpose.msra.mxu0 %v386
    %498 = vmatprep.subr.bf16.mxu0 %v395
    %499 = vmatpush1.bf16.xpose.msra.mxu0 %v394
    %500 = vmatprep.subr.bf16.mxu0 %v403
    %501 = vmatpush1.bf16.xpose.msra.mxu0 %v402
    %502 = vmatprep.subr.bf16.mxu0 %v411
    %503 = vmatpush1.bf16.xpose.msra.mxu0 %v410
    %504 = vmatprep.subr.bf16.mxu0 %v419
    %505 = vmatpush1.bf16.xpose.msra.mxu0 %v418
    %506 = vmatprep.subr.bf16.mxu0 0
    %507 = vmatpush1.bf16.xpose.msra.mxu0 0
    %508 = vmatprep.subr.bf16.mxu0 0
    %509 = vmatpush1.bf16.xpose.msra.mxu0 0
    %510 = vmatprep.subr.bf16.mxu0 0
    %511 = vmatpush1.bf16.xpose.msra.mxu0 0
    %512 = vmatprep.subr.bf16.mxu0 0
    %513 = vmatpush1.bf16.xpose.msra.mxu0 0
    %514 = vmatprep.subr.bf16.mxu0 0
    %515 = vmatpush1.bf16.xpose.msra.mxu0 0
    %516 = vmatprep.subr.bf16.mxu0 0
    %517 = vmatpush1.bf16.xpose.msra.mxu0 0
    %518 = vmatprep.subr.bf16.mxu0 0
    %519 = vmatpush1.bf16.xpose.msra.mxu0 0
    %520 = vmatprep.subr.bf16.mxu0 0
    %521 = vmatpush1.bf16.xpose.msra.mxu0 0
    %522 = vmatprep.mubr.bf16.mxu0 %v155
    %523 = vmatmul.mubr.bf16.gmra.mrb[0].mxu0 %v154
    %v524 = vpop.f32.mrb[0].mxu0
    %v525 = vadd.f32 0.0, %v524
    %v526 = vpop.f32.mrb[0].mxu0
    %v527 = vpop.f32.mrb[0].mxu0
    %v528 = vpop.f32.mrb[0].mxu0
    %529 = vdwg.mxu0
    %530 = vmatprep.subr.bf16.mxu0 %v365
    %531 = vmatpush1.bf16.xpose.msra.mxu0 %v364
    %532 = vmatprep.subr.bf16.mxu0 %v373
    %533 = vmatpush1.bf16.xpose.msra.mxu0 %v372
    %534 = vmatprep.subr.bf16.mxu0 %v381
    %535 = vmatpush1.bf16.xpose.msra.mxu0 %v380
    %536 = vmatprep.subr.bf16.mxu0 %v389
    %537 = vmatpush1.bf16.xpose.msra.mxu0 %v388
    %538 = vmatprep.subr.bf16.mxu0 %v397
    %539 = vmatpush1.bf16.xpose.msra.mxu0 %v396
    %540 = vmatprep.subr.bf16.mxu0 %v405
    %541 = vmatpush1.bf16.xpose.msra.mxu0 %v404
    %542 = vmatprep.subr.bf16.mxu0 %v413
    %543 = vmatpush1.bf16.xpose.msra.mxu0 %v412
    %544 = vmatprep.subr.bf16.mxu0 %v421
    %545 = vmatpush1.bf16.xpose.msra.mxu0 %v420
    %546 = vmatprep.subr.bf16.mxu0 0
    %547 = vmatpush1.bf16.xpose.msra.mxu0 0
    %548 = vmatprep.subr.bf16.mxu0 0
    %549 = vmatpush1.bf16.xpose.msra.mxu0 0
    %550 = vmatprep.subr.bf16.mxu0 0
    %551 = vmatpush1.bf16.xpose.msra.mxu0 0
    %552 = vmatprep.subr.bf16.mxu0 0
    %553 = vmatpush1.bf16.xpose.msra.mxu0 0
    %554 = vmatprep.subr.bf16.mxu0 0
    %555 = vmatpush1.bf16.xpose.msra.mxu0 0
    %556 = vmatprep.subr.bf16.mxu0 0
    %557 = vmatpush1.bf16.xpose.msra.mxu0 0
    %558 = vmatprep.subr.bf16.mxu0 0
    %559 = vmatpush1.bf16.xpose.msra.mxu0 0
    %560 = vmatprep.subr.bf16.mxu0 0
    %561 = vmatpush1.bf16.xpose.msra.mxu0 0
    %562 = vmatprep.mubr.bf16.mxu0 %v157
    %563 = vmatmul.mubr.bf16.gmra.mrb[0].mxu0 %v156
    %v564 = vpop.f32.mrb[0].mxu0
    %v565 = vadd.f32 %v525, %v564
    %v566 = vpop.f32.mrb[0].mxu0
    %v567 = vpop.f32.mrb[0].mxu0
    %v568 = vpop.f32.mrb[0].mxu0
    %569 = vdwg.mxu0
    %570 = vmatprep.subr.bf16.mxu0 %v367
    %571 = vmatpush1.bf16.xpose.msra.mxu0 %v366
    %572 = vmatprep.subr.bf16.mxu0 %v375
    %573 = vmatpush1.bf16.xpose.msra.mxu0 %v374
    %574 = vmatprep.subr.bf16.mxu0 %v383
    %575 = vmatpush1.bf16.xpose.msra.mxu0 %v382
    %576 = vmatprep.subr.bf16.mxu0 %v391
    %577 = vmatpush1.bf16.xpose.msra.mxu0 %v390
    %578 = vmatprep.subr.bf16.mxu0 %v399
    %579 = vmatpush1.bf16.xpose.msra.mxu0 %v398
    %580 = vmatprep.subr.bf16.mxu0 %v407
    %581 = vmatpush1.bf16.xpose.msra.mxu0 %v406
    %582 = vmatprep.subr.bf16.mxu0 %v415
    %583 = vmatpush1.bf16.xpose.msra.mxu0 %v414
    %584 = vmatprep.subr.bf16.mxu0 %v423
    %585 = vmatpush1.bf16.xpose.msra.mxu0 %v422
    %586 = vmatprep.subr.bf16.mxu0 0
    %587 = vmatpush1.bf16.xpose.msra.mxu0 0
    %588 = vmatprep.subr.bf16.mxu0 0
    %589 = vmatpush1.bf16.xpose.msra.mxu0 0
    %590 = vmatprep.subr.bf16.mxu0 0
    %591 = vmatpush1.bf16.xpose.msra.mxu0 0
    %592 = vmatprep.subr.bf16.mxu0 0
    %593 = vmatpush1.bf16.xpose.msra.mxu0 0
    %594 = vmatprep.subr.bf16.mxu0 0
    %595 = vmatpush1.bf16.xpose.msra.mxu0 0
    %596 = vmatprep.subr.bf16.mxu0 0
    %597 = vmatpush1.bf16.xpose.msra.mxu0 0
    %598 = vmatprep.subr.bf16.mxu0 0
    %599 = vmatpush1.bf16.xpose.msra.mxu0 0
    %600 = vmatprep.subr.bf16.mxu0 0
    %601 = vmatpush1.bf16.xpose.msra.mxu0 0
    %602 = vmatprep.mubr.bf16.mxu0 %v159
    %603 = vmatmul.mubr.bf16.gmra.mrb[0].mxu0 %v158
    %v604 = vpop.f32.mrb[0].mxu0
    %v605 = vadd.f32 %v565, %v604
    %v606 = vpop.f32.mrb[0].mxu0
    %v607 = vpop.f32.mrb[0].mxu0
    %v608 = vpop.f32.mrb[0].mxu0
    %609 = vdwg.mxu0
    %610 = vmatprep.subr.bf16.mxu0 %v369
    %611 = vmatpush1.bf16.xpose.msra.mxu0 %v368
    %612 = vmatprep.subr.bf16.mxu0 %v377
    %613 = vmatpush1.bf16.xpose.msra.mxu0 %v376
    %614 = vmatprep.subr.bf16.mxu0 %v385
    %615 = vmatpush1.bf16.xpose.msra.mxu0 %v384
    %616 = vmatprep.subr.bf16.mxu0 %v393
    %617 = vmatpush1.bf16.xpose.msra.mxu0 %v392
    %618 = vmatprep.subr.bf16.mxu0 %v401
    %619 = vmatpush1.bf16.xpose.msra.mxu0 %v400
    %620 = vmatprep.subr.bf16.mxu0 %v409
    %621 = vmatpush1.bf16.xpose.msra.mxu0 %v408
    %622 = vmatprep.subr.bf16.mxu0 %v417
    %623 = vmatpush1.bf16.xpose.msra.mxu0 %v416
    %624 = vmatprep.subr.bf16.mxu0 %v425
    %625 = vmatpush1.bf16.xpose.msra.mxu0 %v424
    %626 = vmatprep.subr.bf16.mxu0 0
    %627 = vmatpush1.bf16.xpose.msra.mxu0 0
    %628 = vmatprep.subr.bf16.mxu0 0
    %629 = vmatpush1.bf16.xpose.msra.mxu0 0
    %630 = vmatprep.subr.bf16.mxu0 0
    %631 = vmatpush1.bf16.xpose.msra.mxu0 0
    %632 = vmatprep.subr.bf16.mxu0 0
    %633 = vmatpush1.bf16.xpose.msra.mxu0 0
    %634 = vmatprep.subr.bf16.mxu0 0
    %635 = vmatpush1.bf16.xpose.msra.mxu0 0
    %636 = vmatprep.subr.bf16.mxu0 0
    %637 = vmatpush1.bf16.xpose.msra.mxu0 0
    %638 = vmatprep.subr.bf16.mxu0 0
    %639 = vmatpush1.bf16.xpose.msra.mxu0 0
    %640 = vmatprep.subr.bf16.mxu0 0
    %641 = vmatpush1.bf16.xpose.msra.mxu0 0
    %642 = vmatprep.mubr.bf16.mxu0 %v161
    %643 = vmatmul.mubr.bf16.gmra.mrb[0].mxu0 %v160
    %v644 = vpop.f32.mrb[0].mxu0
    %v645 = vadd.f32 %v605, %v644
    %v646 = vpop.f32.mrb[0].mxu0
    %v647 = vpop.f32.mrb[0].mxu0
    %v648 = vpop.f32.mrb[0].mxu0
    %649 = vdwg.mxu0
    %v650 = vadd.f32 %v73, %v645
    %651 = vst [vmem:[#allocation2] sm:$0xff] %v650
    // Predicated region
    $region38: #{tpu_custom_call.1} parent=1 // pred_check
      %p652 = pneg %p68
    $region39: #{tpu_custom_call.1} parent=1 // pred_check_branch
      %654 = sbr.rel (%p652) target = $region41
    $region40: #{tpu_custom_call.1} parent=1 // pred_region
      %v655 = vld [vmem:[#allocation2] sm:$0xff]
      %v656 = vld [vmem:[#allocation8] sm:$0xff]
      %658 = vset.pattern.permute.xlu0 0
      %659 = vperm.xlu0 %658, %v656
      %v660 = vpop.permute.xlu0 %659
      %v662 = vmul.f32 %v655, %v660
      %v663 = vld [vmem:[#allocation9] sm:$0x1]
      %v665 = vlaneseq
      %v666 = vshrl.u32 %v665, 7
      %v667 = vsub.s32 0, %v666
      %v668 = vrot.slane %v663, %v667
      %v670 = vmul.f32 %v662, %v668
      %671 = vst [vmem:[#allocation11] sm:$0xff] %v670
    $region41: #{tpu_custom_call.1} parent=1 // pred_fallthru
      _
    // Predicated region
    $region42: #{tpu_custom_call.1} parent=1 // pred_check
      _
    $region43: #{tpu_custom_call.1} parent=1 // pred_check_branch
      %673 = sbr.rel (0) target = $region45
    $region44: #{tpu_custom_call.1} parent=1 // pred_region
      %s675 = ssub.s32 128, 128
      %676 = vsyncadd [#allocation5], %s675
      %s678 = sshll.u32 [#allocation11], 4
      %s679 = int_to_ptr.vmem [resolvable:$true] %s678
      %681 = dma.vmem_to_hbm [thread:$0]  %s679, 128, %s4, [#allocation5]
    $region45: #{tpu_custom_call.1} parent=1 // pred_fallthru
      _
    // Predicated region
    $region46: #{tpu_custom_call.1} parent=1 // pred_check
      _
    $region47: #{tpu_custom_call.1} parent=1 // pred_check_branch
      %683 = sbr.rel (0) target = $region49
    $region48: #{tpu_custom_call.1} parent=1 // pred_region
      %684 = dma.done [#allocation5], 128
    $region49: #{tpu_custom_call.1} parent=1 // pred_fallthru
      _
    %685 = vsyncpa [#allocation4], 1
    %686 = vsyncpa [#allocation7], 1
    %687 = vsyncpa [#allocation10], 1
    %688 = vsyncpa [#allocation5], 1

</llo_original>
